<compile_context>
chip_gen: v5e
topology: v5e:2x2
jax: 0.10.0
libtpu: 0.0.40
codegen_flags: <defaults>
</compile_context>

<pallas_src>
import functools

import jax
import jax.numpy as jnp
from jax import lax
from jax.experimental import pallas as pl
from jax.experimental.pallas import tpu as pltpu

LANES = 128
VMEM_LIMIT = 32 * 1024 * 1024  # safe on v5e/v6e (128 MiB) and v7x (64 MiB)


def _device_kind():
    try:
        return jax.devices()[0].device_kind.lower().replace(" ", "")
    except Exception:
        return ""


_KIND = _device_kind()
_IS_V7X = ("v7" in _KIND) or ("tpu7" in _KIND)
_NUM_TC = 2 if _IS_V7X else 1           # only v7x exposes 2 TensorCores
# Bigger blocks on v7x: per-step overhead is a larger fraction at 3.2 TB/s.
_ROW_TILE_MAX = 8192 if _IS_V7X else 4096   # 4/2 MiB f32 input blocks


def _round_up(x, m):
    return (x + m - 1) // m * m


def _sublane_multiple(dtype):
    # Packed-sublane multiple: 8 for 4-byte, 16 for 2-byte, 32 for 1-byte.
    return max(8, 32 // jnp.dtype(dtype).itemsize)


def _pick_row_tile(rows, dtype):
    return min(_ROW_TILE_MAX, _round_up(rows, _sublane_multiple(dtype)))


def _mae_sum_kernel(pred_ref, target_ref, out_ref, acc_ref, *,
                    rows_total, row_tile, needs_mask):
    """Per-core partial sum of |pred - target| over large row tiles."""
    c = pl.program_id(0)        # core axis (CORE_PARALLEL on v7x, size 1 otherwise)
    i = pl.program_id(1)        # row-tile steps within this core ("arbitrary")
    n_inner = pl.num_programs(1)

    @pl.when(i == 0)
    def _():
        acc_ref[...] = jnp.zeros_like(acc_ref)

    def fold(x):
        # Fold the tile down to one (8, 128) vreg with strided VPU adds, so
        # the accumulator never incurs full-tile VMEM load/store traffic.
        return x.reshape(row_tile // 8, 8, LANES).sum(axis=0)

    diff = jnp.abs(pred_ref[...].astype(jnp.float32)
                   - target_ref[...].astype(jnp.float32))

    if not needs_mask:
        acc_ref[...] += fold(diff)
    else:
        # Mask only on the tile(s) that need it (partial last tile and/or a
        # clamped duplicate tile on the v7x core split); the steady-state
        # path stays sub/abs/fold/accumulate only.
        row0 = (c * n_inner + i) * row_tile
        is_full = row0 + row_tile <= rows_total

        @pl.when(is_full)
        def _():
            acc_ref[...] += fold(diff)

        @pl.when(jnp.logical_not(is_full))
        def _():
            row_idx = lax.broadcasted_iota(jnp.int32, diff.shape, 0)
            masked = jnp.where(row0 + row_idx < rows_total, diff, 0.0)
            acc_ref[...] += fold(masked)

    @pl.when(i == n_inner - 1)
    def _():
        out_ref[0, 0] = jnp.sum(acc_ref[...])


def _mae_elementwise_kernel(pred_ref, target_ref, out_ref):
    """reduction='none': elementwise absolute error."""
    out_ref[...] = jnp.abs(pred_ref[...] - target_ref[...]).astype(out_ref.dtype)


def _aligned_slab(flat, n_aligned, tail):
    # Zero-copy reshape when numel is 128-aligned; otherwise slice the aligned
    # prefix (the <128-element tail is handled in plain JAX by the caller).
    if tail:
        flat = lax.slice(flat, (0,), (n_aligned,))
    return flat.reshape(-1, LANES)


def _mae_reduce(pred, target, reduction):
    n = int(pred.size)
    itemsize = jnp.dtype(pred.dtype).itemsize
    flat_p = pred.reshape(-1)
    flat_t = target.reshape(-1)
    n_aligned = (n // LANES) * LANES
    tail = n - n_aligned

    total = jnp.zeros((), jnp.float32)

    if n_aligned:
        pf = _aligned_slab(flat_p, n_aligned, tail)   # original dtype; f32 cast in-kernel
        tf = _aligned_slab(flat_t, n_aligned, tail)
        rows = n_aligned // LANES
        row_tile = _pick_row_tile(rows, pred.dtype)
        nb = pl.cdiv(rows, row_tile)

        # Split rows across TensorCores only where there are two of them.
        n_cores = 2 if (_NUM_TC == 2 and nb >= 2) else 1
        inner = pl.cdiv(nb, n_cores)
        needs_clamp = n_cores * inner > nb
        needs_mask = n_cores * inner * row_tile != rows

        if needs_clamp:
            def in_map(c, i):
                # Duplicated trailing steps are clamped to the last tile; their
                # contribution is zeroed by the in-kernel row mask.
                return (jnp.minimum(c * inner + i, nb - 1), 0)
        else:
            def in_map(c, i):
                return (c * inner + i, 0)

        core_axis = getattr(pltpu, "CORE_PARALLEL", "parallel") if n_cores == 2 \
            else "arbitrary"

        kernel = functools.partial(
            _mae_sum_kernel, rows_total=rows, row_tile=row_tile,
            needs_mask=needs_mask)

        partials = pl.pallas_call(
            kernel,
            out_shape=jax.ShapeDtypeStruct((n_cores, 1), jnp.float32),
            grid_spec=pltpu.PrefetchScalarGridSpec(
                num_scalar_prefetch=0,
                grid=(n_cores, inner),
                in_specs=[
                    pl.BlockSpec((row_tile, LANES), in_map),
                    pl.BlockSpec((row_tile, LANES), in_map),
                ],
                out_specs=pl.BlockSpec((1, 1), lambda c, i: (c, 0),
                                       memory_space=pltpu.MemorySpace.SMEM),
                scratch_shapes=[pltpu.VMEM((8, LANES), jnp.float32)],
            ),
            compiler_params=pltpu.CompilerParams(
                dimension_semantics=(core_axis, "arbitrary"),
                vmem_limit_bytes=VMEM_LIMIT),
            cost_estimate=pl.CostEstimate(
                flops=2 * n_aligned, transcendentals=0,
                bytes_accessed=2 * n_aligned * itemsize),
        )(pf, tf)
        total = jnp.sum(partials)

    if tail:
        tp = flat_p[n_aligned:].astype(jnp.float32)
        tt = flat_t[n_aligned:].astype(jnp.float32)
        total = total + jnp.sum(jnp.abs(tp - tt))

    if reduction == "mean":
        total = total / jnp.float32(n)
    return total.astype(pred.dtype)


def _mae_none(pred, target):
    n = int(pred.size)
    itemsize = jnp.dtype(pred.dtype).itemsize
    orig_shape = pred.shape
    flat_p = pred.reshape(-1)
    flat_t = target.reshape(-1)
    n_aligned = (n // LANES) * LANES
    tail = n - n_aligned

    pieces = []
    if n_aligned:
        pf = _aligned_slab(flat_p, n_aligned, tail)
        tf = _aligned_slab(flat_t, n_aligned, tail)
        rows = n_aligned // LANES
        row_tile = _pick_row_tile(rows, pred.dtype)
        nb = pl.cdiv(rows, row_tile)

        out = pl.pallas_call(
            _mae_elementwise_kernel,
            out_shape=jax.ShapeDtypeStruct((rows, LANES), pred.dtype),
            grid_spec=pltpu.PrefetchScalarGridSpec(
                num_scalar_prefetch=0,
                grid=(nb,),
                in_specs=[
                    pl.BlockSpec((row_tile, LANES), lambda i: (i, 0)),
                    pl.BlockSpec((row_tile, LANES), lambda i: (i, 0)),
                ],
                out_specs=pl.BlockSpec((row_tile, LANES), lambda i: (i, 0)),
            ),
            compiler_params=pltpu.CompilerParams(
                dimension_semantics=("parallel",),
                vmem_limit_bytes=VMEM_LIMIT),
            cost_estimate=pl.CostEstimate(
                flops=2 * n_aligned, transcendentals=0,
                bytes_accessed=3 * n_aligned * itemsize),
        )(pf, tf)
        pieces.append(out.reshape(-1))

    if tail:
        pieces.append(jnp.abs(flat_p[n_aligned:]
                              - flat_t[n_aligned:]).astype(pred.dtype))

    flat_out = pieces[0] if len(pieces) == 1 else jnp.concatenate(pieces)
    return flat_out.reshape(orig_shape)


def mae_loss(pred, target, reduction="mean"):
    """Pallas implementation of F.l1_loss(pred, target, reduction=...)."""
    assert pred.shape == target.shape, "pred/target shape mismatch"
    if reduction == "none":
        return _mae_none(pred, target)
    if reduction in ("mean", "sum"):
        return _mae_reduce(pred, target, reduction)
    raise ValueError(f"unsupported reduction: {reduction}")


class MAELossPallas:
    """Mirror of the PyTorch MAELoss module."""

    def __init__(self, reduction: str = "mean"):
        self.reduction = reduction

    def __call__(self, pred, target, threshold=None):
        # threshold unused, kept for API compatibility with the PyTorch module.
        return mae_loss(pred, target, reduction=self.reduction)


if __name__ == "__main__":
    key = jax.random.PRNGKey(0)
    k1, k2 = jax.random.split(key)
    # [batch, channels, height, width] — matches PyTorch NCHW convention.
    pred = jax.random.normal(k1, (2, 4, 16, 16), dtype=jnp.float32)
    target = jax.random.normal(k2, (2, 4, 16, 16), dtype=jnp.float32)

    loss_fn = MAELossPallas(reduction="mean")
    loss = loss_fn(pred, target)
    jax.block_until_ready(loss)

    # Sanity check against plain-JAX reference.
    ref = jnp.mean(jnp.abs(pred - target))
    assert jnp.allclose(loss, ref, rtol=1e-5, atol=1e-5), (loss, ref)

    # Also exercise 'sum' and 'none' paths.
    loss_sum = MAELossPallas("sum")(pred, target)
    jax.block_until_ready(loss_sum)
    assert jnp.allclose(loss_sum, jnp.sum(jnp.abs(pred - target)), rtol=1e-5)

    loss_none = MAELossPallas("none")(pred, target)
    jax.block_until_ready(loss_none)
    assert loss_none.shape == pred.shape
    assert jnp.allclose(loss_none, jnp.abs(pred - target), rtol=1e-5, atol=1e-6)

    # Ragged shape (numel not a multiple of 128) exercises the prefix + JAX-tail path.
    k3, k4 = jax.random.split(k2)
    p2 = jax.random.normal(k3, (2, 3, 7, 5), dtype=jnp.float32)
    t2 = jax.random.normal(k4, (2, 3, 7, 5), dtype=jnp.float32)
    l2 = MAELossPallas("mean")(p2, t2)
    jax.block_until_ready(l2)
    assert jnp.allclose(l2, jnp.mean(jnp.abs(p2 - t2)), rtol=1e-5, atol=1e-5)
    ln2 = MAELossPallas("none")(p2, t2)
    jax.block_until_ready(ln2)
    assert jnp.allclose(ln2, jnp.abs(p2 - t2), rtol=1e-5, atol=1e-6)

    # bf16 path (16-row sublane packing for the in-kernel f32 cast).
    pb = pred.astype(jnp.bfloat16)
    tb = target.astype(jnp.bfloat16)
    lb = MAELossPallas("mean")(pb, tb)
    jax.block_until_ready(lb)
    assert jnp.allclose(jnp.float32(lb),
                        jnp.mean(jnp.abs(pb.astype(jnp.float32)
                                         - tb.astype(jnp.float32))),
                        rtol=2e-2, atol=2e-2)

    print("KERNEL_OK")
</pallas_src>

<mosaic_0001>
module attributes {stable_mosaic.version = 11 : i64} {
  func.func @_mae_sum_kernel(%arg0: i32, %arg1: i32, %arg2: memref<16x128xf32, #tpu.memory_space<vmem>>, %arg3: memref<16x128xf32, #tpu.memory_space<vmem>>, %arg4: memref<1x1xf32, #tpu.memory_space<smem>>, %arg5: memref<8x128xf32, #tpu.memory_space<vmem>>) attributes {dimension_semantics = [#tpu.dimension_semantics<arbitrary>, #tpu.dimension_semantics<arbitrary>], iteration_bounds = array<i64: 1, 1>, scalar_prefetch = 0 : i64, scratch_operands = 1 : i64, tpu.core_type = #tpu.core_type<tc>, window_params = [{transform_indices = @transform_0, window_bounds = array<i64: 16, 128>}, {transform_indices = @transform_1, window_bounds = array<i64: 16, 128>}, {transform_indices = @transform_2, window_bounds = array<i64: 1, 1>}]} {
    %c0_i32 = arith.constant 0 : i32
    %0 = arith.cmpi eq, %arg1, %c0_i32 : i32
    %1 = arith.extui %0 : i1 to i32
    %c0_i32_0 = arith.constant 0 : i32
    %2 = arith.cmpi ne, %1, %c0_i32_0 : i32
    scf.if %2 {
      %cst_10 = arith.constant 0.000000e+00 : f32
      %15 = vector.broadcast %cst_10 : f32 to vector<8x128xf32>
      %c0_11 = arith.constant 0 : index
      %c0_12 = arith.constant 0 : index
      %16 = vector.load %arg5[%c0_11, %c0_12] : memref<8x128xf32, #tpu.memory_space<vmem>>, vector<8x128xf32>
      tpu.vector_store %arg5[%c0_11, %c0_12], %15 {strides = array<i32>} : memref<8x128xf32, #tpu.memory_space<vmem>>, vector<8x128xf32>,
    } else {
    }
    %c0 = arith.constant 0 : index
    %c0_1 = arith.constant 0 : index
    %3 = vector.load %arg2[%c0, %c0_1] : memref<16x128xf32, #tpu.memory_space<vmem>>, vector<16x128xf32>
    %c0_2 = arith.constant 0 : index
    %c0_3 = arith.constant 0 : index
    %4 = vector.load %arg3[%c0_2, %c0_3] : memref<16x128xf32, #tpu.memory_space<vmem>>, vector<16x128xf32>
    %5 = arith.subf %3, %4 : vector<16x128xf32>
    %6 = math.absf %5 : vector<16x128xf32>
    %c0_4 = arith.constant 0 : index
    %c0_5 = arith.constant 0 : index
    %7 = vector.load %arg5[%c0_4, %c0_5] : memref<8x128xf32, #tpu.memory_space<vmem>>, vector<8x128xf32>
    %8 = vector.shape_cast %6 : vector<16x128xf32> to vector<2x8x128xf32>
    %cst = arith.constant dense<0.000000e+00> : vector<8x128xf32>
    %9 = vector.multi_reduction <add>, %8, %cst [0] : vector<2x8x128xf32> to vector<8x128xf32>
    %10 = arith.addf %7, %9 : vector<8x128xf32>
    %c0_6 = arith.constant 0 : index
    %c0_7 = arith.constant 0 : index
    %11 = vector.load %arg5[%c0_6, %c0_7] : memref<8x128xf32, #tpu.memory_space<vmem>>, vector<8x128xf32>
    tpu.vector_store %arg5[%c0_6, %c0_7], %10 {strides = array<i32>} : memref<8x128xf32, #tpu.memory_space<vmem>>, vector<8x128xf32>,
    %c0_i32_8 = arith.constant 0 : i32
    %12 = arith.cmpi eq, %arg1, %c0_i32_8 : i32
    %13 = arith.extui %12 : i1 to i32
    %c0_i32_9 = arith.constant 0 : i32
    %14 = arith.cmpi ne, %13, %c0_i32_9 : i32
    scf.if %14 {
      %c0_10 = arith.constant 0 : index
      %c0_11 = arith.constant 0 : index
      %15 = vector.load %arg5[%c0_10, %c0_11] : memref<8x128xf32, #tpu.memory_space<vmem>>, vector<8x128xf32>
      %16 = vector.shape_cast %15 : vector<8x128xf32> to vector<1x8x128xf32>
      %cst_12 = arith.constant dense<0.000000e+00> : vector<1xf32>
      %17 = vector.multi_reduction <add>, %16, %cst_12 [1, 2] : vector<1x8x128xf32> to vector<1xf32>
      %18 = vector.shape_cast %17 : vector<1xf32> to vector<1x1x1xf32>
      %19 = vector.extract %18[0, 0, 0] : f32 from vector<1x1x1xf32>
      %c0_13 = arith.constant 0 : index
      %c0_14 = arith.constant 0 : index
      %20 = memref.load %arg4[%c0_13, %c0_14] : memref<1x1xf32, #tpu.memory_space<smem>>
      memref.store %19, %arg4[%c0_13, %c0_14] : memref<1x1xf32, #tpu.memory_space<smem>>
    } else {
    }
    return
  }
  func.func @transform_0(%arg0: i32, %arg1: i32) -> (i32, i32) {
    %c1_i32 = arith.constant 1 : i32
    %0 = arith.muli %arg0, %c1_i32 : i32
    %1 = arith.addi %0, %arg1 : i32
    %c0_i32 = arith.constant 0 : i32
    %c0_i32_0 = arith.constant 0 : i32
    return %1, %c0_i32 : i32, i32
  }
  func.func @transform_1(%arg0: i32, %arg1: i32) -> (i32, i32) {
    %c1_i32 = arith.constant 1 : i32
    %0 = arith.muli %arg0, %c1_i32 : i32
    %1 = arith.addi %0, %arg1 : i32
    %c0_i32 = arith.constant 0 : i32
    %c0_i32_0 = arith.constant 0 : i32
    return %1, %c0_i32 : i32, i32
  }
  func.func @transform_2(%arg0: i32, %arg1: i32) -> (i32, i32) {
    %c0_i32 = arith.constant 0 : i32
    %c0_i32_0 = arith.constant 0 : i32
    return %arg0, %c0_i32 : i32, i32
  }
}

</mosaic_0001>

<llo_original>
// kernel: tpu_custom_call.1
$region0: #{tpu_custom_call.1}
  #allocation0 [shape = 'u32[]', space=smem, size = 0x4, offset = 0x4, fixed_abs, tag = 'smem constant byte address 0x4 - core index']
  #allocation1 [shape = 'u32[72,128]{1,0:T(1,128)}', space=vmem, size = 0x9000, scoped, tag = 'internal scratch']
  #allocation2 [shape = 'f32[8,128]{1,0:T(8,128)}', space=vmem, size = 0x1000, scoped, tag = 'scratch operand']
  %s0 = inlined_call_operand.hbm [shape: f32[16,128], index: 0, kind: input, shape index: {}]
  %s1 = inlined_call_operand.hbm [shape: f32[16,128], index: 1, kind: input, shape index: {}]
  %s2 = inlined_call_operand.hbm [shape: f32[1,1], index: 2, kind: output, shape index: {}]
  %s3 = sld [smem:[#allocation0]]
  $region34: #{tpu_custom_call.1} parent=0
    _
  %s5 = ssub.s32 1, %s3
  %s6 = scalar_select 0, %s5, %s3
  $region1: #{tpu_custom_call.1} parent=0
    #allocation3 [shape = 'u8[8192]{0}', space=vmem, size = 0x2000, scoped, tag = 'input window, operand 0, single buffered']
    #allocation4 [shape = 's32[1]{0}', space=sflag, size = 0x4, scoped, tag = 'scoped memory for tpu_custom_call.1']
    #allocation5 [shape = 's32[1]{0}', space=sflag, size = 0x4, scoped, tag = 'scoped memory for tpu_custom_call.1']
    #allocation6 [shape = 'u8[8192]{0}', space=vmem, size = 0x2000, scoped, tag = 'input window, operand 1, single buffered']
    #allocation7 [shape = 's32[1]{0}', space=sflag, size = 0x4, scoped, tag = 'scoped memory for tpu_custom_call.1']
    #allocation8 [shape = 'u8[512]{0}', space=smem, size = 0x200, scoped, tag = 'output window, operand 0, single buffered']
    %7 = vsyncpa [#allocation4], 0
    %8 = vsyncpa [#allocation7], 0
    %9 = vsyncpa [#allocation5], 0
    // Predicated region
    $region2: #{tpu_custom_call.1} parent=1 // pred_check
      _
    $region3: #{tpu_custom_call.1} parent=1 // pred_check_branch
      %11 = sbr.rel (0) target = $region5
    $region4: #{tpu_custom_call.1} parent=1 // pred_region
      %s12 = sadd.s32 0, 0
      %s13 = smul.u32 2, %s12
      %15 = vsyncadd [#allocation4], 0
      %s16 = smul.addr %s13, 8
      %s17 = scalar_lea.hbm %s0, %s16
      %s18 = sshll.u32 %s17, 4
      %s19 = int_to_ptr.hbm [resolvable:$true] %s18
      %s20 = sshll.u32 [#allocation3], 4
      %s21 = int_to_ptr.vmem [resolvable:$true] %s20
      %26 = dma.hbm_to_vmem [thread:$0]  %s19, 256, %s21, [#allocation4], 128, 128, 8
    $region5: #{tpu_custom_call.1} parent=1 // pred_fallthru
      _
    // Predicated region
    $region6: #{tpu_custom_call.1} parent=1 // pred_check
      _
    $region7: #{tpu_custom_call.1} parent=1 // pred_check_branch
      %28 = sbr.rel (0) target = $region9
    $region8: #{tpu_custom_call.1} parent=1 // pred_region
      %s29 = sadd.s32 0, 0
      %s30 = smul.u32 2, %s29
      %32 = vsyncadd [#allocation7], 0
      %s33 = smul.addr %s30, 8
      %s34 = scalar_lea.hbm %s1, %s33
      %s35 = sshll.u32 %s34, 4
      %s36 = int_to_ptr.hbm [resolvable:$true] %s35
      %s37 = sshll.u32 [#allocation6], 4
      %s38 = int_to_ptr.vmem [resolvable:$true] %s37
      %43 = dma.hbm_to_vmem [thread:$0]  %s36, 256, %s38, [#allocation7], 128, 128, 8
    $region9: #{tpu_custom_call.1} parent=1 // pred_fallthru
      _
    // Predicated region
    $region10: #{tpu_custom_call.1} parent=1 // pred_check
      _
    $region11: #{tpu_custom_call.1} parent=1 // pred_check_branch
      %45 = sbr.rel (0) target = $region13
    $region12: #{tpu_custom_call.1} parent=1 // pred_region
      %47 = dma.done [#allocation4], 256
    $region13: #{tpu_custom_call.1} parent=1 // pred_fallthru
      _
    // Predicated region
    $region14: #{tpu_custom_call.1} parent=1 // pred_check
      _
    $region15: #{tpu_custom_call.1} parent=1 // pred_check_branch
      %49 = sbr.rel (0) target = $region17
    $region16: #{tpu_custom_call.1} parent=1 // pred_region
      %51 = dma.done [#allocation7], 256
    $region17: #{tpu_custom_call.1} parent=1 // pred_fallthru
      _
    %s52 = sadd.s32 0, 0
    %s53 = smul.u32 2, %s52
    %s54 = sadd.s32 0, 0
    %s55 = smul.u32 2, %s54
    %p56 = scmp.eq.s32.totalorder 0, 0
    // Predicated region
    $region18: #{tpu_custom_call.1} parent=1 // pred_check
      %p57 = pneg %p56
    $region19: #{tpu_custom_call.1} parent=1 // pred_check_branch
      %59 = sbr.rel (%p57) target = $region21
    $region20: #{tpu_custom_call.1} parent=1 // pred_region
      %60 = vst [vmem:[#allocation2] sm:$0xff] 0.0
    $region21: #{tpu_custom_call.1} parent=1 // pred_fallthru
      _
    %v61 = vld [vmem:[#allocation3] sm:$0xff]
    %v62 = vld [vmem:[#allocation3 + $0x8] sm:$0xff]
    %v63 = vld [vmem:[#allocation6] sm:$0xff]
    %v64 = vld [vmem:[#allocation6 + $0x8] sm:$0xff]
    %v65 = vsub.f32 %v61, %v63
    %v66 = vsub.f32 %v62, %v64
    %v67 = vand.u32 2147483647, %v65
    %v68 = vand.u32 2147483647, %v66
    %v69 = vld [vmem:[#allocation2] sm:$0xff]
    %v70 = vadd.f32 %v67, %v68
    %v71 = vadd.f32 %v69, %v70
    %72 = vst [vmem:[#allocation2] sm:$0xff] %v71
    // Predicated region
    $region22: #{tpu_custom_call.1} parent=1 // pred_check
      %p73 = pneg %p56
    $region23: #{tpu_custom_call.1} parent=1 // pred_check_branch
      %75 = sbr.rel (%p73) target = $region25
    $region24: #{tpu_custom_call.1} parent=1 // pred_region
      %v76 = vld [vmem:[#allocation2] sm:$0xff]
      %77 = vadd.xlane.f32.xlu0 %v76
      %v78 = vpop.xlane.xlu0 %77
      %v79 = vrot.slane %v78, 4
      %v80 = vadd.f32 %v78, %v79
      %v81 = vrot.slane %v80, 2
      %v82 = vadd.f32 %v80, %v81
      %v83 = vrot.slane %v82, 1
      %v84 = vadd.f32 %v82, %v83
      %s85 = vtos %v84
      %s86 = scalar_lea.smem [#allocation8], 0
      %87 = sst [smem:[%s86]] %s85
    $region25: #{tpu_custom_call.1} parent=1 // pred_fallthru
      _
    // Predicated region
    $region26: #{tpu_custom_call.1} parent=1 // pred_check
      _
    $region27: #{tpu_custom_call.1} parent=1 // pred_check_branch
      %89 = sbr.rel (0) target = $region29
    $region28: #{tpu_custom_call.1} parent=1 // pred_region
      %91 = vsyncadd [#allocation5], 0
      %s93 = sshll.u32 %s2, 4
      %s94 = int_to_ptr.hbm [resolvable:$true] %s93
      %96 = dma.smem_to_hbm [#allocation8], 16, %s94, [#allocation5]
    $region29: #{tpu_custom_call.1} parent=1 // pred_fallthru
      _
    // Predicated region
    $region30: #{tpu_custom_call.1} parent=1 // pred_check
      _
    $region31: #{tpu_custom_call.1} parent=1 // pred_check_branch
      %98 = sbr.rel (0) target = $region33
    $region32: #{tpu_custom_call.1} parent=1 // pred_region
      %100 = dma.done [#allocation5], 16
    $region33: #{tpu_custom_call.1} parent=1 // pred_fallthru
      _
    %101 = sfence
    %102 = vsyncpa [#allocation4], 1
    %103 = vsyncpa [#allocation7], 1
    %104 = vsyncpa [#allocation5], 1

</llo_original>
